<compile_context>
chip_gen: v5e
topology: v5e:2x2
jax: 0.10.0
libtpu: 0.0.40
codegen_flags: <defaults>
</compile_context>

<pallas_src>
import numpy as np
import jax
import jax.numpy as jnp
from jax.experimental import pallas as pl
from jax.experimental.pallas import tpu as pltpu

CIN, COUT, K, STRIDE, PAD = 22, 600, 3, 2, 14
NEG_SLOPE = -0.036066667

KDIM = K * K * CIN                                   # 198 folded contraction
KDIM_PAD = ((KDIM + 7) // 8) * 8                     # 200: 8-aligned sublanes
COUT_PAD = ((COUT + 127) // 128) * 128               # 640: lane-dense output


def _convt_leaky_kernel(p_ref, w_ref, b_ref, o_ref):
    # Single MXU matmul (bf16 operands, f32 accumulation), then bias + leaky
    # where epilogue in f32, lane-dense (M_PAD, 640) store.
    acc = jnp.dot(p_ref[...], w_ref[...], preferred_element_type=jnp.float32)
    v1 = acc + b_ref[...]                            # bias broadcast (1, COUT_PAD)
    o_ref[...] = jnp.where(v1 > 0, v1, v1 * NEG_SLOPE)


def prepare_params(weight, bias):
    """One-time weight/bias transform (hoisted out of the per-call forward).

    weight: (CIN, COUT, K, K) f32  ->  (KDIM_PAD, COUT_PAD) bf16, spatially
    flipped and folded along the contraction axis; bias -> (1, COUT_PAD) f32.
    """
    wf = jnp.transpose(weight[:, :, ::-1, ::-1], (2, 3, 0, 1)).reshape(KDIM, COUT)
    wf = jnp.pad(wf, ((0, KDIM_PAD - KDIM), (0, COUT_PAD - COUT)))
    wf = wf.astype(jnp.bfloat16)                                    # (200, 640)
    b2 = jnp.pad(bias, (0, COUT_PAD - COUT)).reshape(1, COUT_PAD)
    b2 = b2.astype(jnp.float32)                                     # (1, 640)
    return wf, b2


def model_forward(x_nchw, wf_bf16, b2_f32):
    """x_nchw: (1, CIN, H, W) f32; wf_bf16/b2_f32 from prepare_params()."""
    n, ci, h, w_sp = x_nchw.shape
    assert n == 1 and ci == CIN
    oh = (h - 1) * STRIDE - 2 * PAD + K
    ow = (w_sp - 1) * STRIDE - 2 * PAD + K
    assert oh > 0 and ow > 0, "spatial size too small for padding=14"
    m = oh * ow
    m_pad = ((m + 7) // 8) * 8                                      # 32

    x_hwc = jnp.transpose(x_nchw[0], (1, 2, 0))                     # (H, W, Cin)

    # transposed conv == zero-upsample then stride-1 conv with flipped kernel.
    # Build only the cropped window xc = upsampled[start:start+oh+K-1, ...].
    start = PAD - (K - 1)                                           # = 12
    xh, xw = oh + K - 1, ow + K - 1
    rows = [j for j in range(xh)
            if (start + j) % STRIDE == 0 and 0 <= (start + j) // STRIDE < h]
    cols = [j for j in range(xw)
            if (start + j) % STRIDE == 0 and 0 <= (start + j) // STRIDE < w_sp]
    assert rows and cols
    r0, c0 = (start + rows[0]) // STRIDE, (start + cols[0]) // STRIDE
    src = x_hwc[r0:r0 + len(rows), c0:c0 + len(cols), :]
    xc = jnp.zeros((xh, xw, CIN), x_hwc.dtype)
    xc = xc.at[rows[0]:rows[-1] + 1:STRIDE,
               cols[0]:cols[-1] + 1:STRIDE, :].set(src)             # (7, 7, Cin)

    # im2col with the 9 taps folded into the contraction axis: (oh*ow, 198),
    # padded to (32, 200) for unmasked sublane loads, cast to bf16.
    patches = jnp.concatenate(
        [xc[kh:kh + oh, kw:kw + ow, :].reshape(m, CIN)
         for kh in range(K) for kw in range(K)], axis=-1)           # (25, 198)
    patches = jnp.pad(patches, ((0, m_pad - m), (0, KDIM_PAD - KDIM)))
    patches = patches.astype(jnp.bfloat16)                          # (32, 200)

    cost = pl.CostEstimate(
        flops=2 * m_pad * KDIM_PAD * COUT_PAD,
        transcendentals=0,
        bytes_accessed=(m_pad * KDIM_PAD * 2 + KDIM_PAD * COUT_PAD * 2
                        + COUT_PAD * 4 + m_pad * COUT_PAD * 4),
    )

    out2d = pl.pallas_call(
        _convt_leaky_kernel,
        out_shape=jax.ShapeDtypeStruct((m_pad, COUT_PAD), jnp.float32),
        in_specs=[pl.BlockSpec(memory_space=pltpu.MemorySpace.VMEM)] * 3,
        out_specs=pl.BlockSpec(memory_space=pltpu.MemorySpace.VMEM),
        compiler_params=pltpu.CompilerParams(allow_input_fusion=[0]),
        cost_estimate=cost,
    )(patches, wf_bf16, b2_f32)

    out = out2d[:m, :COUT].reshape(oh, ow, COUT)
    return jnp.transpose(out, (2, 0, 1))[None]                      # (1, Cout, oh, ow)


def _reference(x_nchw, weight, bias):
    """Direct numpy scatter reference for ConvTranspose2d + leaky where."""
    x = np.asarray(x_nchw)[0].transpose(1, 2, 0)                    # (H, W, Cin)
    w = np.asarray(weight)                                          # (Cin, Cout, K, K)
    h, w_sp, _ = x.shape
    fh, fw = (h - 1) * STRIDE + K, (w_sp - 1) * STRIDE + K
    y_full = np.zeros((fh, fw, COUT), np.float32)
    for kh in range(K):
        for kw in range(K):
            y_full[kh:kh + (h - 1) * STRIDE + 1:STRIDE,
                   kw:kw + (w_sp - 1) * STRIDE + 1:STRIDE] += np.einsum(
                       'hwc,co->hwo', x, w[:, :, kh, kw])
    oh = (h - 1) * STRIDE - 2 * PAD + K
    ow = (w_sp - 1) * STRIDE - 2 * PAD + K
    y = y_full[PAD:PAD + oh, PAD:PAD + ow] + np.asarray(bias)[None, None, :]
    y = np.where(y > 0, y, y * NEG_SLOPE)
    return y.transpose(2, 0, 1)[None]                               # (1, Cout, oh, ow)


if __name__ == "__main__":
    key = jax.random.PRNGKey(0)
    kx, kw, kb = jax.random.split(key, 3)

    H = W = 16                                                      # valid spatial size
    x14 = jax.random.normal(kx, (1, CIN, H, W), jnp.float32)

    # deterministic ConvTranspose2d-style init
    bound = 1.0 / np.sqrt(CIN * K * K)
    weight = jax.random.uniform(kw, (CIN, COUT, K, K), jnp.float32, -bound, bound)
    bias = jax.random.uniform(kb, (COUT,), jnp.float32, -bound, bound)

    # one-time parameter transform (hoisted: NOT redone per forward call)
    wf_bf16, b2_f32 = jax.block_until_ready(prepare_params(weight, bias))

    forward = jax.jit(model_forward)
    out = jax.block_until_ready(forward(x14, wf_bf16, b2_f32))

    ref = _reference(x14, weight, bias)
    assert out.shape == (1, COUT, 5, 5), out.shape
    # tolerance sized for bf16 MXU operands with f32 accumulation over K=198
    assert np.allclose(np.asarray(out), ref, rtol=1e-2, atol=1e-2)
    print("KERNEL_OK")
</pallas_src>

<mosaic_0001>
module attributes {stable_mosaic.version = 11 : i64} {
  func.func @_convt_leaky_kernel(%arg0: memref<32x200xbf16, #tpu.memory_space<vmem>>, %arg1: memref<200x640xbf16, #tpu.memory_space<vmem>>, %arg2: memref<1x640xf32, #tpu.memory_space<vmem>>, %arg3: memref<32x640xf32, #tpu.memory_space<vmem>>) attributes {dimension_semantics = [], scalar_prefetch = 0 : i64, scratch_operands = 0 : i64, tpu.core_type = #tpu.core_type<tc>} {
    %c0 = arith.constant 0 : index
    %c0_0 = arith.constant 0 : index
    %0 = vector.load %arg0[%c0, %c0_0] : memref<32x200xbf16, #tpu.memory_space<vmem>>, vector<32x200xbf16>
    %c0_1 = arith.constant 0 : index
    %c0_2 = arith.constant 0 : index
    %1 = vector.load %arg1[%c0_1, %c0_2] : memref<200x640xbf16, #tpu.memory_space<vmem>>, vector<200x640xbf16>
    %cst = arith.constant dense<0.000000e+00> : vector<32x640xf32>
    %2 = tpu.matmul %0, %1, %cst {dimension_numbers = #tpu.dot_dimension_numbers<[1], [0], [0], [1], [0, 0, 1, 1], [], []>} : vector<32x200xbf16>, vector<200x640xbf16>, vector<32x640xf32> -> vector<32x640xf32>
    %c0_3 = arith.constant 0 : index
    %c0_4 = arith.constant 0 : index
    %3 = vector.load %arg2[%c0_3, %c0_4] : memref<1x640xf32, #tpu.memory_space<vmem>>, vector<1x640xf32>
    %4 = vector.broadcast %3 : vector<1x640xf32> to vector<32x640xf32>
    %5 = arith.addf %2, %4 : vector<32x640xf32>
    %cst_5 = arith.constant 0.000000e+00 : f32
    %6 = vector.broadcast %cst_5 : f32 to vector<32x640xf32>
    %7 = arith.cmpf ogt, %5, %6 : vector<32x640xf32>
    %cst_6 = arith.constant -0.0360666662 : f32
    %8 = vector.broadcast %cst_6 : f32 to vector<32x640xf32>
    %9 = arith.mulf %5, %8 : vector<32x640xf32>
    %10 = arith.select %7, %5, %9 : vector<32x640xi1>, vector<32x640xf32>
    %c0_7 = arith.constant 0 : index
    %c0_8 = arith.constant 0 : index
    %11 = vector.load %arg3[%c0_7, %c0_8] : memref<32x640xf32, #tpu.memory_space<vmem>>, vector<32x640xf32>
    tpu.vector_store %arg3[%c0_7, %c0_8], %10 {strides = array<i32>} : memref<32x640xf32, #tpu.memory_space<vmem>>, vector<32x640xf32>,
    return
  }
}

</mosaic_0001>

<llo_original>
// kernel: model_forward.1
$region0: #{model_forward.1}
  #allocation0 [shape = 'u32[]', space=smem, size = 0x4, offset = 0x4, fixed_abs, tag = 'smem constant byte address 0x4 - core index']
  #allocation1 [shape = 'u32[72,128]{1,0:T(1,128)}', space=vmem, size = 0x9000, scoped, tag = 'internal scratch']
  %s0 = inlined_call_operand.vmem [shape: bf16[32,200], index: 0, kind: input, shape index: {}]
  %s1 = inlined_call_operand.vmem [shape: bf16[200,640], index: 1, kind: input, shape index: {}]
  %s2 = inlined_call_operand.vmem [shape: f32[1,640], index: 2, kind: input, shape index: {}]
  %s3 = inlined_call_operand.vmem [shape: f32[32,640], index: 3, kind: output, shape index: {}]
  %s4 = sld [smem:[#allocation0]]
  $region22: #{model_forward.1} parent=0
    _
  %s6 = ssub.s32 1, %s4
  %s7 = scalar_select 0, %s6, %s4
  // Predicated region
  $region2: #{model_forward.1} parent=0 // pred_check
    _
  $region3: #{model_forward.1} parent=0 // pred_check_branch
    %9 = sbr.rel (0) target = $region5
  $region4: #{model_forward.1} parent=0 // pred_region
    _
  $region5: #{model_forward.1} parent=0 // pred_fallthru
    _
  // Predicated region
  $region6: #{model_forward.1} parent=0 // pred_check
    _
  $region7: #{model_forward.1} parent=0 // pred_check_branch
    %11 = sbr.rel (0) target = $region9
  $region8: #{model_forward.1} parent=0 // pred_region
    _
  $region9: #{model_forward.1} parent=0 // pred_fallthru
    _
  // Predicated region
  $region10: #{model_forward.1} parent=0 // pred_check
    _
  $region11: #{model_forward.1} parent=0 // pred_check_branch
    %13 = sbr.rel (0) target = $region13
  $region12: #{model_forward.1} parent=0 // pred_region
    _
  $region13: #{model_forward.1} parent=0 // pred_fallthru
    _
  %v15 = vld [vmem:[%s0] sm:$0xff]
  %v16 = vld [vmem:[%s0 + $0x8] sm:$0xff]
  %v17 = vld [vmem:[%s0 + $0x10] sm:$0xff]
  %v18 = vld [vmem:[%s0 + $0x18] sm:$0xff]
  %v19 = vld [vmem:[%s1] sm:$0xff]
  %v20 = vld [vmem:[%s1 + $0x8] sm:$0xff]
  %v21 = vld [vmem:[%s1 + $0x10] sm:$0xf]
  %v22 = vld [vmem:[%s1 + $0x14] sm:$0xff]
  %v23 = vld [vmem:[%s1 + $0x1c] sm:$0xff]
  %v24 = vld [vmem:[%s1 + $0x24] sm:$0xf]
  %v25 = vld [vmem:[%s1 + $0x28] sm:$0xff]
  %v26 = vld [vmem:[%s1 + $0x30] sm:$0xff]
  %v27 = vld [vmem:[%s1 + $0x38] sm:$0xf]
  %v28 = vld [vmem:[%s1 + $0x3c] sm:$0xff]
  %v29 = vld [vmem:[%s1 + $0x44] sm:$0xff]
  %v30 = vld [vmem:[%s1 + $0x4c] sm:$0xf]
  %v31 = vld [vmem:[%s1 + $0x50] sm:$0xff]
  %v32 = vld [vmem:[%s1 + $0x58] sm:$0xff]
  %v33 = vld [vmem:[%s1 + $0x60] sm:$0xf]
  %v34 = vld [vmem:[%s1 + $0x64] sm:$0xff]
  %v35 = vld [vmem:[%s1 + $0x6c] sm:$0xff]
  %v36 = vld [vmem:[%s1 + $0x74] sm:$0xf]
  %v37 = vld [vmem:[%s1 + $0x78] sm:$0xff]
  %v38 = vld [vmem:[%s1 + $0x80] sm:$0xff]
  %v39 = vld [vmem:[%s1 + $0x88] sm:$0xf]
  %v40 = vld [vmem:[%s1 + $0x8c] sm:$0xff]
  %v41 = vld [vmem:[%s1 + $0x94] sm:$0xff]
  %v42 = vld [vmem:[%s1 + $0x9c] sm:$0xf]
  %v43 = vld [vmem:[%s1 + $0xa0] sm:$0xff]
  %v44 = vld [vmem:[%s1 + $0xa8] sm:$0xff]
  %v45 = vld [vmem:[%s1 + $0xb0] sm:$0xf]
  %v46 = vld [vmem:[%s1 + $0xb4] sm:$0xff]
  %v47 = vld [vmem:[%s1 + $0xbc] sm:$0xff]
  %v48 = vld [vmem:[%s1 + $0xc4] sm:$0xf]
  %v49 = vld [vmem:[%s1 + $0xc8] sm:$0xff]
  %v50 = vld [vmem:[%s1 + $0xd0] sm:$0xff]
  %v51 = vld [vmem:[%s1 + $0xd8] sm:$0xf]
  %v52 = vld [vmem:[%s1 + $0xdc] sm:$0xff]
  %v53 = vld [vmem:[%s1 + $0xe4] sm:$0xff]
  %v54 = vld [vmem:[%s1 + $0xec] sm:$0xf]
  %v55 = vld [vmem:[%s1 + $0xf0] sm:$0xff]
  %v56 = vld [vmem:[%s1 + $0xf8] sm:$0xff]
  %v57 = vld [vmem:[%s1 + $0x100] sm:$0xf]
  %v58 = vld [vmem:[%s1 + $0x104] sm:$0xff]
  %v59 = vld [vmem:[%s1 + $0x10c] sm:$0xff]
  %v60 = vld [vmem:[%s1 + $0x114] sm:$0xf]
  %v61 = vld [vmem:[%s1 + $0x118] sm:$0xff]
  %v62 = vld [vmem:[%s1 + $0x120] sm:$0xff]
  %v63 = vld [vmem:[%s1 + $0x128] sm:$0xf]
  %v64 = vld [vmem:[%s1 + $0x12c] sm:$0xff]
  %v65 = vld [vmem:[%s1 + $0x134] sm:$0xff]
  %v66 = vld [vmem:[%s1 + $0x13c] sm:$0xf]
  %v67 = vld [vmem:[%s1 + $0x140] sm:$0xff]
  %v68 = vld [vmem:[%s1 + $0x148] sm:$0xff]
  %v69 = vld [vmem:[%s1 + $0x150] sm:$0xf]
  %v70 = vld [vmem:[%s1 + $0x154] sm:$0xff]
  %v71 = vld [vmem:[%s1 + $0x15c] sm:$0xff]
  %v72 = vld [vmem:[%s1 + $0x164] sm:$0xf]
  %v73 = vld [vmem:[%s1 + $0x168] sm:$0xff]
  %v74 = vld [vmem:[%s1 + $0x170] sm:$0xff]
  %v75 = vld [vmem:[%s1 + $0x178] sm:$0xf]
  %v76 = vld [vmem:[%s1 + $0x17c] sm:$0xff]
  %v77 = vld [vmem:[%s1 + $0x184] sm:$0xff]
  %v78 = vld [vmem:[%s1 + $0x18c] sm:$0xf]
  %v79 = vld [vmem:[%s1 + $0x190] sm:$0xff]
  %v80 = vld [vmem:[%s1 + $0x198] sm:$0xff]
  %v81 = vld [vmem:[%s1 + $0x1a0] sm:$0xf]
  %v82 = vld [vmem:[%s1 + $0x1a4] sm:$0xff]
  %v83 = vld [vmem:[%s1 + $0x1ac] sm:$0xff]
  %v84 = vld [vmem:[%s1 + $0x1b4] sm:$0xf]
  %v85 = vld [vmem:[%s1 + $0x1b8] sm:$0xff]
  %v86 = vld [vmem:[%s1 + $0x1c0] sm:$0xff]
  %v87 = vld [vmem:[%s1 + $0x1c8] sm:$0xf]
  %v88 = vld [vmem:[%s1 + $0x1cc] sm:$0xff]
  %v89 = vld [vmem:[%s1 + $0x1d4] sm:$0xff]
  %v90 = vld [vmem:[%s1 + $0x1dc] sm:$0xf]
  %v91 = vld [vmem:[%s1 + $0x1e0] sm:$0xff]
  %v92 = vld [vmem:[%s1 + $0x1e8] sm:$0xff]
  %v93 = vld [vmem:[%s1 + $0x1f0] sm:$0xf]
  %v94 = vld [vmem:[%s2] sm:$0x1f]
  %v96 = vperm.slane %v94, 0
  %v97 = vperm.slane %v94, 1
  %v98 = vperm.slane %v94, 2
  %v99 = vperm.slane %v94, 3
  %v100 = vperm.slane %v94, 4
  %v110 = vunpack.c.l.b16 %v15
  %v111 = vunpack.c.h.b16 %v15
  %v112 = vunpack.c.l.b16 %v16
  %v113 = vunpack.c.h.b16 %v16
  %v114 = vunpack.c.l.b16 %v17
  %v115 = vunpack.c.h.b16 %v17
  %v116 = vunpack.c.l.b16 %v18
  %v117 = vunpack.c.h.b16 %v18
  %v118 = vpack.c.b16 %v112, %v110
  %v119 = vpack.c.b16 %v113, %v111
  %v120 = vpack.c.b16 %v116, %v114
  %v121 = vpack.c.b16 %v117, %v115
  %v199 = vunpack.c.l.b16 %v19
  %v200 = vunpack.c.h.b16 %v19
  %v201 = vunpack.c.l.b16 %v20
  %v202 = vunpack.c.h.b16 %v20
  %v203 = vunpack.c.l.b16 %v21
  %v204 = vunpack.c.l.b16 %v22
  %v205 = vunpack.c.h.b16 %v22
  %v206 = vunpack.c.l.b16 %v23
  %v207 = vunpack.c.h.b16 %v23
  %v208 = vunpack.c.l.b16 %v24
  %v209 = vunpack.c.l.b16 %v25
  %v210 = vunpack.c.h.b16 %v25
  %v211 = vunpack.c.l.b16 %v26
  %v212 = vunpack.c.h.b16 %v26
  %v213 = vunpack.c.l.b16 %v27
  %v214 = vunpack.c.l.b16 %v28
  %v215 = vunpack.c.h.b16 %v28
  %v216 = vunpack.c.l.b16 %v29
  %v217 = vunpack.c.h.b16 %v29
  %v218 = vunpack.c.l.b16 %v30
  %v219 = vunpack.c.l.b16 %v31
  %v220 = vunpack.c.h.b16 %v31
  %v221 = vunpack.c.l.b16 %v32
  %v222 = vunpack.c.h.b16 %v32
  %v223 = vunpack.c.l.b16 %v33
  %v224 = vunpack.c.l.b16 %v34
  %v225 = vunpack.c.h.b16 %v34
  %v226 = vunpack.c.l.b16 %v35
  %v227 = vunpack.c.h.b16 %v35
  %v228 = vunpack.c.l.b16 %v36
  %v229 = vunpack.c.l.b16 %v37
  %v230 = vunpack.c.h.b16 %v37
  %v231 = vunpack.c.l.b16 %v38
  %v232 = vunpack.c.h.b16 %v38
  %v233 = vunpack.c.l.b16 %v39
  %v234 = vunpack.c.l.b16 %v40
  %v235 = vunpack.c.h.b16 %v40
  %v236 = vunpack.c.l.b16 %v41
  %v237 = vunpack.c.h.b16 %v41
  %v238 = vunpack.c.l.b16 %v42
  %v239 = vunpack.c.l.b16 %v43
  %v240 = vunpack.c.h.b16 %v43
  %v241 = vunpack.c.l.b16 %v44
  %v242 = vunpack.c.h.b16 %v44
  %v243 = vunpack.c.l.b16 %v45
  %v244 = vunpack.c.l.b16 %v46
  %v245 = vunpack.c.h.b16 %v46
  %v246 = vunpack.c.l.b16 %v47
  %v247 = vunpack.c.h.b16 %v47
  %v248 = vunpack.c.l.b16 %v48
  %v249 = vunpack.c.l.b16 %v49
  %v250 = vunpack.c.h.b16 %v49
  %v251 = vunpack.c.l.b16 %v50
  %v252 = vunpack.c.h.b16 %v50
  %v253 = vunpack.c.l.b16 %v51
  %v254 = vunpack.c.l.b16 %v52
  %v255 = vunpack.c.h.b16 %v52
  %v256 = vunpack.c.l.b16 %v53
  %v257 = vunpack.c.h.b16 %v53
  %v258 = vunpack.c.l.b16 %v54
  %v259 = vunpack.c.l.b16 %v55
  %v260 = vunpack.c.h.b16 %v55
  %v261 = vunpack.c.l.b16 %v56
  %v262 = vunpack.c.h.b16 %v56
  %v263 = vunpack.c.l.b16 %v57
  %v264 = vunpack.c.l.b16 %v58
  %v265 = vunpack.c.h.b16 %v58
  %v266 = vunpack.c.l.b16 %v59
  %v267 = vunpack.c.h.b16 %v59
  %v268 = vunpack.c.l.b16 %v60
  %v269 = vunpack.c.l.b16 %v61
  %v270 = vunpack.c.h.b16 %v61
  %v271 = vunpack.c.l.b16 %v62
  %v272 = vunpack.c.h.b16 %v62
  %v273 = vunpack.c.l.b16 %v63
  %v274 = vunpack.c.l.b16 %v64
  %v275 = vunpack.c.h.b16 %v64
  %v276 = vunpack.c.l.b16 %v65
  %v277 = vunpack.c.h.b16 %v65
  %v278 = vunpack.c.l.b16 %v66
  %v279 = vunpack.c.l.b16 %v67
  %v280 = vunpack.c.h.b16 %v67
  %v281 = vunpack.c.l.b16 %v68
  %v282 = vunpack.c.h.b16 %v68
  %v283 = vunpack.c.l.b16 %v69
  %v284 = vunpack.c.l.b16 %v70
  %v285 = vunpack.c.h.b16 %v70
  %v286 = vunpack.c.l.b16 %v71
  %v287 = vunpack.c.h.b16 %v71
  %v288 = vunpack.c.l.b16 %v72
  %v289 = vunpack.c.l.b16 %v73
  %v290 = vunpack.c.h.b16 %v73
  %v291 = vunpack.c.l.b16 %v74
  %v292 = vunpack.c.h.b16 %v74
  %v293 = vunpack.c.l.b16 %v75
  %v294 = vunpack.c.l.b16 %v76
  %v295 = vunpack.c.h.b16 %v76
  %v296 = vunpack.c.l.b16 %v77
  %v297 = vunpack.c.h.b16 %v77
  %v298 = vunpack.c.l.b16 %v78
  %v299 = vunpack.c.l.b16 %v79
  %v300 = vunpack.c.h.b16 %v79
  %v301 = vunpack.c.l.b16 %v80
  %v302 = vunpack.c.h.b16 %v80
  %v303 = vunpack.c.l.b16 %v81
  %v304 = vunpack.c.l.b16 %v82
  %v305 = vunpack.c.h.b16 %v82
  %v306 = vunpack.c.l.b16 %v83
  %v307 = vunpack.c.h.b16 %v83
  %v308 = vunpack.c.l.b16 %v84
  %v309 = vunpack.c.l.b16 %v85
  %v310 = vunpack.c.h.b16 %v85
  %v311 = vunpack.c.l.b16 %v86
  %v312 = vunpack.c.h.b16 %v86
  %v313 = vunpack.c.l.b16 %v87
  %v314 = vunpack.c.l.b16 %v88
  %v315 = vunpack.c.h.b16 %v88
  %v316 = vunpack.c.l.b16 %v89
  %v317 = vunpack.c.h.b16 %v89
  %v318 = vunpack.c.l.b16 %v90
  %v319 = vunpack.c.l.b16 %v91
  %v320 = vunpack.c.h.b16 %v91
  %v321 = vunpack.c.l.b16 %v92
  %v322 = vunpack.c.h.b16 %v92
  %v323 = vunpack.c.l.b16 %v93
  %v324 = vpack.c.b16 %v204, %v199
  %v325 = vpack.c.b16 %v205, %v200
  %v326 = vpack.c.b16 %v206, %v201
  %v327 = vpack.c.b16 %v207, %v202
  %v328 = vpack.c.b16 %v208, %v203
  %v329 = vpack.c.b16 %v214, %v209
  %v330 = vpack.c.b16 %v215, %v210
  %v331 = vpack.c.b16 %v216, %v211
  %v332 = vpack.c.b16 %v217, %v212
  %v333 = vpack.c.b16 %v218, %v213
  %v334 = vpack.c.b16 %v224, %v219
  %v335 = vpack.c.b16 %v225, %v220
  %v336 = vpack.c.b16 %v226, %v221
  %v337 = vpack.c.b16 %v227, %v222
  %v338 = vpack.c.b16 %v228, %v223
  %v339 = vpack.c.b16 %v234, %v229
  %v340 = vpack.c.b16 %v235, %v230
  %v341 = vpack.c.b16 %v236, %v231
  %v342 = vpack.c.b16 %v237, %v232
  %v343 = vpack.c.b16 %v238, %v233
  %v344 = vpack.c.b16 %v244, %v239
  %v345 = vpack.c.b16 %v245, %v240
  %v346 = vpack.c.b16 %v246, %v241
  %v347 = vpack.c.b16 %v247, %v242
  %v348 = vpack.c.b16 %v248, %v243
  %v349 = vpack.c.b16 %v254, %v249
  %v350 = vpack.c.b16 %v255, %v250
  %v351 = vpack.c.b16 %v256, %v251
  %v352 = vpack.c.b16 %v257, %v252
  %v353 = vpack.c.b16 %v258, %v253
  %v354 = vpack.c.b16 %v264, %v259
  %v355 = vpack.c.b16 %v265, %v260
  %v356 = vpack.c.b16 %v266, %v261
  %v357 = vpack.c.b16 %v267, %v262
  %v358 = vpack.c.b16 %v268, %v263
  %v359 = vpack.c.b16 %v274, %v269
  %v360 = vpack.c.b16 %v275, %v270
  %v361 = vpack.c.b16 %v276, %v271
  %v362 = vpack.c.b16 %v277, %v272
  %v363 = vpack.c.b16 %v278, %v273
  %v364 = vpack.c.b16 %v284, %v279
  %v365 = vpack.c.b16 %v285, %v280
  %v366 = vpack.c.b16 %v286, %v281
  %v367 = vpack.c.b16 %v287, %v282
  %v368 = vpack.c.b16 %v288, %v283
  %v369 = vpack.c.b16 %v294, %v289
  %v370 = vpack.c.b16 %v295, %v290
  %v371 = vpack.c.b16 %v296, %v291
  %v372 = vpack.c.b16 %v297, %v292
  %v373 = vpack.c.b16 %v298, %v293
  %v374 = vpack.c.b16 %v304, %v299
  %v375 = vpack.c.b16 %v305, %v300
  %v376 = vpack.c.b16 %v306, %v301
  %v377 = vpack.c.b16 %v307, %v302
  %v378 = vpack.c.b16 %v308, %v303
  %v379 = vpack.c.b16 %v314, %v309
  %v380 = vpack.c.b16 %v315, %v310
  %v381 = vpack.c.b16 %v316, %v311
  %v382 = vpack.c.b16 %v317, %v312
  %v383 = vpack.c.b16 %v318, %v313
  %v384 = vpack.c.b16 %v319, %v319
  %v385 = vpack.c.b16 %v320, %v320
  %v386 = vpack.c.b16 %v321, %v321
  %v387 = vpack.c.b16 %v322, %v322
  %v388 = vpack.c.b16 %v323, %v323
  %vm449 = vcmask 588800
  %v451 = vsel %vm449, %v119, 0
  %v454 = vsel %vm449, %v121, 0
  %vm456 = vcmask 1043456
  %v458 = vsel %vm456, %v384, 0
  %v461 = vsel %vm456, %v385, 0
  %v464 = vsel %vm456, %v386, 0
  %v467 = vsel %vm456, %v387, 0
  %v470 = vsel %vm456, %v388, 0
  %472 = vmatpush.bf16.msra.mxu0 %v359
  %473 = vmatpush.bf16.msra.mxu0 %v354
  %474 = vmatpush.bf16.msra.mxu0 %v349
  %475 = vmatpush.bf16.msra.mxu0 %v344
  %476 = vmatpush.bf16.msra.mxu0 %v339
  %477 = vmatpush.bf16.msra.mxu0 %v334
  %478 = vmatpush.bf16.msra.mxu0 %v329
  %479 = vmatpush.bf16.msra.mxu0 %v324
  %480 = vmatmul.bf16.gmra.mxu0 %v118
  %v481 = vpop.f32.mrf.mxu0
  %v482 = vadd.f32 %v96, %v481
  %v483 = vpop.f32.mrf.mxu0
  %v484 = vadd.f32 %v96, %v483
  %485 = vmatmul.bf16.gmra.mxu0 %v120
  %v486 = vpop.f32.mrf.mxu0
  %v487 = vadd.f32 %v96, %v486
  %v488 = vpop.f32.mrf.mxu0
  %v489 = vadd.f32 %v96, %v488
  %490 = vdwg.mxu0
  %491 = vmatpush.bf16.msra.mxu0 0
  %492 = vmatpush.bf16.msra.mxu0 0
  %493 = vmatpush.bf16.msra.mxu0 0
  %494 = vmatpush.bf16.msra.mxu0 %v458
  %495 = vmatpush.bf16.msra.mxu0 %v379
  %496 = vmatpush.bf16.msra.mxu0 %v374
  %497 = vmatpush.bf16.msra.mxu0 %v369
  %498 = vmatpush.bf16.msra.mxu0 %v364
  %499 = vmatmul.bf16.gmra.mxu0 %v451
  %v500 = vpop.f32.mrf.mxu0
  %v501 = vadd.f32 %v482, %v500
  %v502 = vpop.f32.mrf.mxu0
  %v503 = vadd.f32 %v484, %v502
  %504 = vmatmul.bf16.gmra.mxu0 %v454
  %v505 = vpop.f32.mrf.mxu0
  %v506 = vadd.f32 %v487, %v505
  %v507 = vpop.f32.mrf.mxu0
  %v508 = vadd.f32 %v489, %v507
  %509 = vdwg.mxu0
  %510 = vmatpush.bf16.msra.mxu0 %v360
  %511 = vmatpush.bf16.msra.mxu0 %v355
  %512 = vmatpush.bf16.msra.mxu0 %v350
  %513 = vmatpush.bf16.msra.mxu0 %v345
  %514 = vmatpush.bf16.msra.mxu0 %v340
  %515 = vmatpush.bf16.msra.mxu0 %v335
  %516 = vmatpush.bf16.msra.mxu0 %v330
  %517 = vmatpush.bf16.msra.mxu0 %v325
  %518 = vmatmul.bf16.gmra.mxu0 %v118
  %v519 = vpop.f32.mrf.mxu0
  %v520 = vadd.f32 %v97, %v519
  %v521 = vpop.f32.mrf.mxu0
  %v522 = vadd.f32 %v97, %v521
  %523 = vmatmul.bf16.gmra.mxu0 %v120
  %v524 = vpop.f32.mrf.mxu0
  %v525 = vadd.f32 %v97, %v524
  %v526 = vpop.f32.mrf.mxu0
  %v527 = vadd.f32 %v97, %v526
  %528 = vdwg.mxu0
  %529 = vmatpush.bf16.msra.mxu0 0
  %530 = vmatpush.bf16.msra.mxu0 0
  %531 = vmatpush.bf16.msra.mxu0 0
  %532 = vmatpush.bf16.msra.mxu0 %v461
  %533 = vmatpush.bf16.msra.mxu0 %v380
  %534 = vmatpush.bf16.msra.mxu0 %v375
  %535 = vmatpush.bf16.msra.mxu0 %v370
  %536 = vmatpush.bf16.msra.mxu0 %v365
  %537 = vmatmul.bf16.gmra.mxu0 %v451
  %v538 = vpop.f32.mrf.mxu0
  %v539 = vadd.f32 %v520, %v538
  %v540 = vpop.f32.mrf.mxu0
  %v541 = vadd.f32 %v522, %v540
  %542 = vmatmul.bf16.gmra.mxu0 %v454
  %v543 = vpop.f32.mrf.mxu0
  %v544 = vadd.f32 %v525, %v543
  %v545 = vpop.f32.mrf.mxu0
  %v546 = vadd.f32 %v527, %v545
  %547 = vdwg.mxu0
  %548 = vmatpush.bf16.msra.mxu0 %v361
  %549 = vmatpush.bf16.msra.mxu0 %v356
  %550 = vmatpush.bf16.msra.mxu0 %v351
  %551 = vmatpush.bf16.msra.mxu0 %v346
  %552 = vmatpush.bf16.msra.mxu0 %v341
  %553 = vmatpush.bf16.msra.mxu0 %v336
  %554 = vmatpush.bf16.msra.mxu0 %v331
  %555 = vmatpush.bf16.msra.mxu0 %v326
  %556 = vmatmul.bf16.gmra.mxu0 %v118
  %v557 = vpop.f32.mrf.mxu0
  %v558 = vadd.f32 %v98, %v557
  %v559 = vpop.f32.mrf.mxu0
  %v560 = vadd.f32 %v98, %v559
  %561 = vmatmul.bf16.gmra.mxu0 %v120
  %v562 = vpop.f32.mrf.mxu0
  %v563 = vadd.f32 %v98, %v562
  %v564 = vpop.f32.mrf.mxu0
  %v565 = vadd.f32 %v98, %v564
  %566 = vdwg.mxu0
  %567 = vmatpush.bf16.msra.mxu0 0
  %568 = vmatpush.bf16.msra.mxu0 0
  %569 = vmatpush.bf16.msra.mxu0 0
  %570 = vmatpush.bf16.msra.mxu0 %v464
  %571 = vmatpush.bf16.msra.mxu0 %v381
  %572 = vmatpush.bf16.msra.mxu0 %v376
  %573 = vmatpush.bf16.msra.mxu0 %v371
  %574 = vmatpush.bf16.msra.mxu0 %v366
  %575 = vmatmul.bf16.gmra.mxu0 %v451
  %v576 = vpop.f32.mrf.mxu0
  %v577 = vadd.f32 %v558, %v576
  %v578 = vpop.f32.mrf.mxu0
  %v579 = vadd.f32 %v560, %v578
  %580 = vmatmul.bf16.gmra.mxu0 %v454
  %v581 = vpop.f32.mrf.mxu0
  %v582 = vadd.f32 %v563, %v581
  %v583 = vpop.f32.mrf.mxu0
  %v584 = vadd.f32 %v565, %v583
  %585 = vdwg.mxu0
  %586 = vmatpush.bf16.msra.mxu0 %v362
  %587 = vmatpush.bf16.msra.mxu0 %v357
  %588 = vmatpush.bf16.msra.mxu0 %v352
  %589 = vmatpush.bf16.msra.mxu0 %v347
  %590 = vmatpush.bf16.msra.mxu0 %v342
  %591 = vmatpush.bf16.msra.mxu0 %v337
  %592 = vmatpush.bf16.msra.mxu0 %v332
  %593 = vmatpush.bf16.msra.mxu0 %v327
  %594 = vmatmul.bf16.gmra.mxu0 %v118
  %v595 = vpop.f32.mrf.mxu0
  %v596 = vadd.f32 %v99, %v595
  %v597 = vpop.f32.mrf.mxu0
  %v598 = vadd.f32 %v99, %v597
  %599 = vmatmul.bf16.gmra.mxu0 %v120
  %v600 = vpop.f32.mrf.mxu0
  %v601 = vadd.f32 %v99, %v600
  %v602 = vpop.f32.mrf.mxu0
  %v603 = vadd.f32 %v99, %v602
  %604 = vdwg.mxu0
  %605 = vmatpush.bf16.msra.mxu0 0
  %606 = vmatpush.bf16.msra.mxu0 0
  %607 = vmatpush.bf16.msra.mxu0 0
  %608 = vmatpush.bf16.msra.mxu0 %v467
  %609 = vmatpush.bf16.msra.mxu0 %v382
  %610 = vmatpush.bf16.msra.mxu0 %v377
  %611 = vmatpush.bf16.msra.mxu0 %v372
  %612 = vmatpush.bf16.msra.mxu0 %v367
  %613 = vmatmul.bf16.gmra.mxu0 %v451
  %v614 = vpop.f32.mrf.mxu0
  %v615 = vadd.f32 %v596, %v614
  %v616 = vpop.f32.mrf.mxu0
  %v617 = vadd.f32 %v598, %v616
  %618 = vmatmul.bf16.gmra.mxu0 %v454
  %v619 = vpop.f32.mrf.mxu0
  %v620 = vadd.f32 %v601, %v619
  %v621 = vpop.f32.mrf.mxu0
  %v622 = vadd.f32 %v603, %v621
  %623 = vdwg.mxu0
  %624 = vmatpush.bf16.msra.mxu0 %v363
  %625 = vmatpush.bf16.msra.mxu0 %v358
  %626 = vmatpush.bf16.msra.mxu0 %v353
  %627 = vmatpush.bf16.msra.mxu0 %v348
  %628 = vmatpush.bf16.msra.mxu0 %v343
  %629 = vmatpush.bf16.msra.mxu0 %v338
  %630 = vmatpush.bf16.msra.mxu0 %v333
  %631 = vmatpush.bf16.msra.mxu0 %v328
  %632 = vmatmul.bf16.gmra.mxu0 %v118
  %v633 = vpop.f32.mrf.mxu0
  %v634 = vadd.f32 %v100, %v633
  %v635 = vpop.f32.mrf.mxu0
  %v636 = vadd.f32 %v100, %v635
  %637 = vmatmul.bf16.gmra.mxu0 %v120
  %v638 = vpop.f32.mrf.mxu0
  %v639 = vadd.f32 %v100, %v638
  %v640 = vpop.f32.mrf.mxu0
  %v641 = vadd.f32 %v100, %v640
  %642 = vdwg.mxu0
  %643 = vmatpush.bf16.msra.mxu0 0
  %644 = vmatpush.bf16.msra.mxu0 0
  %645 = vmatpush.bf16.msra.mxu0 0
  %646 = vmatpush.bf16.msra.mxu0 %v470
  %647 = vmatpush.bf16.msra.mxu0 %v383
  %648 = vmatpush.bf16.msra.mxu0 %v378
  %649 = vmatpush.bf16.msra.mxu0 %v373
  %650 = vmatpush.bf16.msra.mxu0 %v368
  %651 = vmatmul.bf16.gmra.mxu0 %v451
  %v652 = vpop.f32.mrf.mxu0
  %v653 = vadd.f32 %v634, %v652
  %v654 = vpop.f32.mrf.mxu0
  %v655 = vadd.f32 %v636, %v654
  %656 = vmatmul.bf16.gmra.mxu0 %v454
  %v657 = vpop.f32.mrf.mxu0
  %v658 = vadd.f32 %v639, %v657
  %v659 = vpop.f32.mrf.mxu0
  %v660 = vadd.f32 %v641, %v659
  %661 = vdwg.mxu0
  %vm662 = vcmp.gt.f32.partialorder %v501, 0.0
  %vm663 = vcmp.gt.f32.partialorder %v539, 0.0
  %vm664 = vcmp.gt.f32.partialorder %v577, 0.0
  %vm665 = vcmp.gt.f32.partialorder %v615, 0.0
  %vm666 = vcmp.gt.f32.partialorder %v653, 0.0
  %vm667 = vcmp.gt.f32.partialorder %v503, 0.0
  %vm668 = vcmp.gt.f32.partialorder %v541, 0.0
  %vm669 = vcmp.gt.f32.partialorder %v579, 0.0
  %vm670 = vcmp.gt.f32.partialorder %v617, 0.0
  %vm671 = vcmp.gt.f32.partialorder %v655, 0.0
  %vm672 = vcmp.gt.f32.partialorder %v506, 0.0
  %vm673 = vcmp.gt.f32.partialorder %v544, 0.0
  %vm674 = vcmp.gt.f32.partialorder %v582, 0.0
  %vm675 = vcmp.gt.f32.partialorder %v620, 0.0
  %vm676 = vcmp.gt.f32.partialorder %v658, 0.0
  %vm677 = vcmp.gt.f32.partialorder %v508, 0.0
  %vm678 = vcmp.gt.f32.partialorder %v546, 0.0
  %vm679 = vcmp.gt.f32.partialorder %v584, 0.0
  %vm680 = vcmp.gt.f32.partialorder %v622, 0.0
  %vm681 = vcmp.gt.f32.partialorder %v660, 0.0
  %v682 = vmul.f32 %v501, -0.036066666
  %v683 = vmul.f32 %v539, -0.036066666
  %v684 = vmul.f32 %v577, -0.036066666
  %v685 = vmul.f32 %v615, -0.036066666
  %v686 = vmul.f32 %v653, -0.036066666
  %v687 = vmul.f32 %v503, -0.036066666
  %v688 = vmul.f32 %v541, -0.036066666
  %v689 = vmul.f32 %v579, -0.036066666
  %v690 = vmul.f32 %v617, -0.036066666
  %v691 = vmul.f32 %v655, -0.036066666
  %v692 = vmul.f32 %v506, -0.036066666
  %v693 = vmul.f32 %v544, -0.036066666
  %v694 = vmul.f32 %v582, -0.036066666
  %v695 = vmul.f32 %v620, -0.036066666
  %v696 = vmul.f32 %v658, -0.036066666
  %v697 = vmul.f32 %v508, -0.036066666
  %v698 = vmul.f32 %v546, -0.036066666
  %v699 = vmul.f32 %v584, -0.036066666
  %v700 = vmul.f32 %v622, -0.036066666
  %v701 = vmul.f32 %v660, -0.036066666
  %v702 = vsel %vm662, %v501, %v682
  %v703 = vsel %vm663, %v539, %v683
  %v704 = vsel %vm664, %v577, %v684
  %v705 = vsel %vm665, %v615, %v685
  %v706 = vsel %vm666, %v653, %v686
  %v707 = vsel %vm667, %v503, %v687
  %v708 = vsel %vm668, %v541, %v688
  %v709 = vsel %vm669, %v579, %v689
  %v710 = vsel %vm670, %v617, %v690
  %v711 = vsel %vm671, %v655, %v691
  %v712 = vsel %vm672, %v506, %v692
  %v713 = vsel %vm673, %v544, %v693
  %v714 = vsel %vm674, %v582, %v694
  %v715 = vsel %vm675, %v620, %v695
  %v716 = vsel %vm676, %v658, %v696
  %v717 = vsel %vm677, %v508, %v697
  %v718 = vsel %vm678, %v546, %v698
  %v719 = vsel %vm679, %v584, %v699
  %v720 = vsel %vm680, %v622, %v700
  %v721 = vsel %vm681, %v660, %v701
  %722 = vst [vmem:[%s3] sm:$0xff] %v702
  %723 = vst [vmem:[%s3 + $0x8] sm:$0xff] %v703
  %724 = vst [vmem:[%s3 + $0x10] sm:$0xff] %v704
  %725 = vst [vmem:[%s3 + $0x18] sm:$0xff] %v705
  %726 = vst [vmem:[%s3 + $0x20] sm:$0xff] %v706
  %727 = vst [vmem:[%s3 + $0x28] sm:$0xff] %v707
  %728 = vst [vmem:[%s3 + $0x30] sm:$0xff] %v708
  %729 = vst [vmem:[%s3 + $0x38] sm:$0xff] %v709
  %730 = vst [vmem:[%s3 + $0x40] sm:$0xff] %v710
  %731 = vst [vmem:[%s3 + $0x48] sm:$0xff] %v711
  %732 = vst [vmem:[%s3 + $0x50] sm:$0xff] %v712
  %733 = vst [vmem:[%s3 + $0x58] sm:$0xff] %v713
  %734 = vst [vmem:[%s3 + $0x60] sm:$0xff] %v714
  %735 = vst [vmem:[%s3 + $0x68] sm:$0xff] %v715
  %736 = vst [vmem:[%s3 + $0x70] sm:$0xff] %v716
  %737 = vst [vmem:[%s3 + $0x78] sm:$0xff] %v717
  %738 = vst [vmem:[%s3 + $0x80] sm:$0xff] %v718
  %739 = vst [vmem:[%s3 + $0x88] sm:$0xff] %v719
  %740 = vst [vmem:[%s3 + $0x90] sm:$0xff] %v720
  %741 = vst [vmem:[%s3 + $0x98] sm:$0xff] %v721
  // Predicated region
  $region14: #{model_forward.1} parent=0 // pred_check
    _
  $region15: #{model_forward.1} parent=0 // pred_check_branch
    %743 = sbr.rel (0) target = $region17
  $region16: #{model_forward.1} parent=0 // pred_region
    _
  $region17: #{model_forward.1} parent=0 // pred_fallthru
    _
  // Predicated region
  $region18: #{model_forward.1} parent=0 // pred_check
    _
  $region19: #{model_forward.1} parent=0 // pred_check_branch
    %745 = sbr.rel (0) target = $region21
  $region20: #{model_forward.1} parent=0 // pred_region
    _
  $region21: #{model_forward.1} parent=0 // pred_fallthru
    _

</llo_original>
